<compile_context>
chip_gen: v6e
topology: v6e:2x2x1
jax: 0.10.0
libtpu: 0.0.40
codegen_flags: <defaults>
</compile_context>

<pallas_src>
import jax
import jax.numpy as jnp
from jax import lax
from jax.experimental import pallas as pl
from jax.experimental.pallas import tpu as pltpu


def _cdiv(a, b):
    return -(-a // b)


def _round_up(x, m):
    return ((x + m - 1) // m) * m


def _vmem_capacity_bytes():
    try:
        return int(pltpu.get_tpu_info().vmem_capacity_bytes)
    except Exception:
        return 64 << 20  # conservative fallback: v7x per-TensorCore VMEM


def _mxu_width():
    try:
        kind = jax.devices()[0].device_kind.lower()
        if "v5e" in kind or "v5 lite" in kind or "v5lite" in kind:
            return 128
    except Exception:
        pass
    return 256


def _largest_divisor_tile(dim, cap, step):
    """Largest multiple of `step` that divides `dim` and is <= cap (None if none)."""
    best = None
    t = step
    while t <= min(dim, cap):
        if dim % t == 0:
            best = t
        t += step
    return best


# ---------------------------------------------------------------------------
# Kernels
# ---------------------------------------------------------------------------
def _make_fused_kernel(compute_dtype):
    # Y_tile = X_tile @ G, with G = P^T P precomputed once in the wrapper.
    def kernel(x_ref, g_ref, o_ref):
        x = x_ref[...].astype(compute_dtype)           # in-kernel cast (hidden under MXU)
        y = jnp.dot(x, g_ref[...], preferred_element_type=jnp.float32)
        o_ref[...] = y.astype(o_ref.dtype)
    return kernel


def _make_two_mm_kernel(compute_dtype):
    # T = X_tile @ P^T (contract last dims, no in-kernel transpose), Y_tile = T @ P.
    def kernel(x_ref, p_ref, o_ref):
        x = x_ref[...].astype(compute_dtype)
        p = p_ref[...]
        t = lax.dot_general(
            x, p, dimension_numbers=(((1,), (1,)), ((), ())),
            preferred_element_type=jnp.float32)        # (tm, projdim)
        y = jnp.dot(t.astype(compute_dtype), p, preferred_element_type=jnp.float32)
        o_ref[...] = y.astype(o_ref.dtype)
    return kernel


def _make_proj_kernel(compute_dtype):
    # Large-imdim pass 1: T = X @ P^T, accumulated over imdim-K tiles.
    def kernel(x_ref, p_ref, t_ref, acc_ref):
        k = pl.program_id(1)

        @pl.when(k == 0)
        def _():
            acc_ref[...] = jnp.zeros_like(acc_ref)

        x = x_ref[...].astype(compute_dtype)
        acc_ref[...] += lax.dot_general(
            x, p_ref[...], dimension_numbers=(((1,), (1,)), ((), ())),
            preferred_element_type=jnp.float32)

        @pl.when(k == pl.num_programs(1) - 1)
        def _():
            t_ref[...] = acc_ref[...].astype(t_ref.dtype)
    return kernel


def _make_projT_kernel(compute_dtype):
    # Large-imdim pass 2: Y[:, n_tile] = T @ P[:, n_tile].
    def kernel(t_ref, p_ref, o_ref):
        t = t_ref[...].astype(compute_dtype)
        y = jnp.dot(t, p_ref[...], preferred_element_type=jnp.float32)
        o_ref[...] = y.astype(o_ref.dtype)
    return kernel


# ---------------------------------------------------------------------------
# Wrapper
# ---------------------------------------------------------------------------
def proj_projT_forward(x, proj_mat, *, use_bf16=False, tm=None, tk=None, tn=None,
                       imdim_tile_threshold=4096):
    """Y = X @ P^T @ P applied per channel.  x: [B, C, H, W]; proj_mat: [projdim, H*W]."""
    B, C, H, W = x.shape
    imdim = H * W
    projdim = proj_mat.shape[0]
    assert proj_mat.shape == (projdim, imdim)

    M = B * C
    x2d = x.reshape(M, imdim)

    out_dtype = x.dtype
    compute_dtype = jnp.bfloat16 if use_bf16 else x.dtype
    x_item = jnp.dtype(x.dtype).itemsize
    out_item = jnp.dtype(out_dtype).itemsize
    w_item = jnp.dtype(compute_dtype).itemsize

    vmem_cap = _vmem_capacity_bytes()
    budget = int(0.70 * vmem_cap)        # tile-sizing budget
    vmem_ceiling = int(0.90 * vmem_cap)  # hard cap handed to the compiler

    def _vmem_limit(needed):
        return int(min(vmem_ceiling, max(32 << 20, needed + (8 << 20))))

    def _pick_tm(per_row_bytes, fixed_bytes, cap=1024):
        if tm is not None:
            return tm
        avail = budget - fixed_bytes
        t = max(8, avail // max(per_row_bytes, 1))
        t = min(cap, t, _round_up(M, 8))
        # Keep >= 2 row-grid steps when M allows it so v7x's two TensorCores
        # both get work (one extra grid step is negligible on v5e/v6e).
        t = min(t, max(8, _round_up(_cdiv(M, 2), 8)))
        return max(8, (t // 8) * 8)

    mxu_w = _mxu_width()

    # Fused Y = X @ (P^T P): one lane-dense matmul, but pays 2*imdim^2*projdim
    # FLOPs for G.  Only take it when G is small, the FLOP inflation is modest
    # for this generation's MXU width, and M is large enough to amortize G.
    use_fused = (
        imdim <= 2 * _round_up(projdim, mxu_w)
        and 2 * imdim * imdim * w_item <= budget // 2
        and M >= 4 * projdim
    )
    use_tiled = (not use_fused) and (imdim % 128 == 0) and (imdim >= imdim_tile_threshold)

    if not use_tiled:
        # ---- single-call path: whole-imdim row blocks ----------------------
        if use_fused:
            w = (proj_mat.T @ proj_mat).astype(compute_dtype)   # [imdim, imdim]
            kernel = _make_fused_kernel(compute_dtype)
            inter_bytes = imdim * 4
        else:
            w = proj_mat.astype(compute_dtype)                  # [projdim, imdim]
            kernel = _make_two_mm_kernel(compute_dtype)
            inter_bytes = (imdim + 2 * projdim) * 4

        weight_bytes = int(w.shape[0]) * int(w.shape[1]) * w_item
        # Per-row VMEM: double-buffered input + output blocks + f32/cast headroom.
        per_row = 2 * imdim * x_item + 2 * imdim * out_item + inter_bytes + imdim * 4
        tm_ = _pick_tm(per_row, 2 * weight_bytes)
        needed = tm_ * per_row + 2 * weight_bytes

        y2d = pl.pallas_call(
            kernel,
            out_shape=jax.ShapeDtypeStruct((M, imdim), out_dtype),
            grid_spec=pltpu.PrefetchScalarGridSpec(
                num_scalar_prefetch=0,
                grid=(_cdiv(M, tm_),),                          # no pad / no slice
                in_specs=[
                    pl.BlockSpec((tm_, imdim), lambda i: (i, 0)),
                    pl.BlockSpec(w.shape, lambda i: (0, 0)),    # weight stays resident
                ],
                out_specs=pl.BlockSpec((tm_, imdim), lambda i: (i, 0)),
            ),
            compiler_params=pltpu.CompilerParams(
                dimension_semantics=("parallel",),
                vmem_limit_bytes=_vmem_limit(needed),
            ),
        )(x2d, w)
        return y2d.reshape(B, C, H, W)

    # ---- large-imdim path: two pipelined passes with K / N tiling ----------
    # Pass 1:  T[M, projdim] = X @ P^T, accumulated over imdim-K tiles.
    # Pass 2:  Y[M, imdim]   = T @ P, tiled over imdim output columns.
    w1 = proj_mat.astype(compute_dtype)                         # [projdim, imdim]

    tk_ = tk if tk is not None else _largest_divisor_tile(imdim, 2048, 128)
    tn_ = tn
    if tn_ is None:
        tn_ = (_largest_divisor_tile(imdim, 2048, 256)
               or _largest_divisor_tile(imdim, 2048, 128))

    per_row1 = 2 * tk_ * x_item + 3 * projdim * 4 + tk_ * w_item + tk_ * 4
    fixed1 = 2 * projdim * tk_ * w_item
    per_row2 = 2 * projdim * 4 + 2 * tn_ * out_item + tn_ * 4 + projdim * w_item
    fixed2 = 2 * projdim * tn_ * w_item
    tm_ = _pick_tm(max(per_row1, per_row2), max(fixed1, fixed2))

    needed1 = tm_ * per_row1 + fixed1
    t2d = pl.pallas_call(
        _make_proj_kernel(compute_dtype),
        out_shape=jax.ShapeDtypeStruct((M, projdim), jnp.float32),
        grid_spec=pltpu.PrefetchScalarGridSpec(
            num_scalar_prefetch=0,
            grid=(_cdiv(M, tm_), imdim // tk_),
            in_specs=[
                pl.BlockSpec((tm_, tk_), lambda i, k: (i, k)),
                pl.BlockSpec((projdim, tk_), lambda i, k: (0, k)),
            ],
            out_specs=pl.BlockSpec((tm_, projdim), lambda i, k: (i, 0)),
            scratch_shapes=[pltpu.VMEM((tm_, projdim), jnp.float32)],
        ),
        compiler_params=pltpu.CompilerParams(
            dimension_semantics=("parallel", "arbitrary"),
            vmem_limit_bytes=_vmem_limit(needed1),
        ),
    )(x2d, w1)

    needed2 = tm_ * per_row2 + fixed2
    y2d = pl.pallas_call(
        _make_projT_kernel(compute_dtype),
        out_shape=jax.ShapeDtypeStruct((M, imdim), out_dtype),
        grid_spec=pltpu.PrefetchScalarGridSpec(
            num_scalar_prefetch=0,
            grid=(_cdiv(M, tm_), imdim // tn_),
            in_specs=[
                pl.BlockSpec((tm_, projdim), lambda i, j: (i, 0)),
                pl.BlockSpec((projdim, tn_), lambda i, j: (0, j)),
            ],
            out_specs=pl.BlockSpec((tm_, tn_), lambda i, j: (i, j)),
        ),
        compiler_params=pltpu.CompilerParams(
            dimension_semantics=("parallel", "parallel"),
            vmem_limit_bytes=_vmem_limit(needed2),
        ),
    )(t2d, w1)
    return y2d.reshape(B, C, H, W)


def _reference(x, proj_mat):
    B, C, H, W = x.shape
    x2d = x.reshape(B * C, H * W)
    return ((x2d @ proj_mat.T) @ proj_mat).reshape(B, C, H, W)


if __name__ == "__main__":
    key = jax.random.PRNGKey(0)
    kx, kp, kx2 = jax.random.split(key, 3)

    # Small shapes consistent with the module's forward: x[B,C,H,W], imdim=H*W.
    B, C, H, W = 2, 4, 16, 16
    imdim = H * W          # 256
    projdim = 64

    x = jax.random.normal(kx, (B, C, H, W), dtype=jnp.float32)
    # Deterministic stand-in for proj_mat.normal_(norm_mean=0, norm_std=1).
    proj_mat = jax.random.normal(kp, (projdim, imdim), dtype=jnp.float32)
    y_ref = _reference(x, proj_mat)

    # 1) Default path at demo shape (M=8 -> two-matmul, whole-imdim blocks).
    y = jax.block_until_ready(proj_projT_forward(x, proj_mat))
    assert jnp.allclose(y, y_ref, atol=1e-3, rtol=1e-3), "mismatch (two-mm path)"

    # 2) Fused G = P^T P path (M >= 4*projdim amortizes the precompute).
    xb = jax.random.normal(kx2, (64, 4, H, W), dtype=jnp.float32)
    yb = jax.block_until_ready(proj_projT_forward(xb, proj_mat))
    yb_ref = _reference(xb, proj_mat)
    assert jnp.allclose(yb, yb_ref, atol=1e-3, rtol=1e-3), "mismatch (fused path)"

    # 3) K/N-tiled two-pass path (forced at this small imdim for coverage).
    yt = jax.block_until_ready(
        proj_projT_forward(x, proj_mat, imdim_tile_threshold=imdim, tk=128, tn=128))
    assert jnp.allclose(yt, y_ref, atol=1e-3, rtol=1e-3), "mismatch (tiled path)"

    # 4) bf16 compute (in-kernel cast, f32 accumulation) with a looser check.
    ybf = jax.block_until_ready(proj_projT_forward(x, proj_mat, use_bf16=True))
    rel = jnp.linalg.norm(ybf - y_ref) / jnp.linalg.norm(y_ref)
    assert rel < 3e-2, f"bf16 relative error too large: {rel}"

    print("KERNEL_OK")
</pallas_src>

<mosaic_0001>
module attributes {stable_mosaic.version = 11 : i64} {
  func.func @kernel(%arg0: i32, %arg1: memref<8x256xf32, #tpu.memory_space<vmem>>, %arg2: memref<64x256xf32, #tpu.memory_space<vmem>>, %arg3: memref<8x256xf32, #tpu.memory_space<vmem>>) attributes {dimension_semantics = [#tpu.dimension_semantics<parallel>], iteration_bounds = array<i64: 1>, scalar_prefetch = 0 : i64, scratch_operands = 0 : i64, tpu.core_type = #tpu.core_type<tc>, window_params = [{transform_indices = @transform_0, window_bounds = array<i64: 8, 256>}, {pipeline_mode = #tpu.pipeline_mode<synchronous>, transform_indices = @transform_1, window_bounds = array<i64: 64, 256>}, {transform_indices = @transform_2, window_bounds = array<i64: 8, 256>}]} {
    %c0 = arith.constant 0 : index
    %c0_0 = arith.constant 0 : index
    %0 = vector.load %arg1[%c0, %c0_0] : memref<8x256xf32, #tpu.memory_space<vmem>>, vector<8x256xf32>
    %c0_1 = arith.constant 0 : index
    %c0_2 = arith.constant 0 : index
    %1 = vector.load %arg2[%c0_1, %c0_2] : memref<64x256xf32, #tpu.memory_space<vmem>>, vector<64x256xf32>
    %cst = arith.constant dense<0.000000e+00> : vector<8x64xf32>
    %2 = tpu.matmul %0, %1, %cst {dimension_numbers = #tpu.dot_dimension_numbers<[1], [1], [0], [0], [0, 0, 1, 0], [], []>} : vector<8x256xf32>, vector<64x256xf32>, vector<8x64xf32> -> vector<8x64xf32>
    %cst_3 = arith.constant dense<0.000000e+00> : vector<8x256xf32>
    %3 = tpu.matmul %2, %1, %cst_3 {dimension_numbers = #tpu.dot_dimension_numbers<[1], [0], [0], [1], [0, 0, 1, 1], [], []>} : vector<8x64xf32>, vector<64x256xf32>, vector<8x256xf32> -> vector<8x256xf32>
    %c0_4 = arith.constant 0 : index
    %c0_5 = arith.constant 0 : index
    %4 = vector.load %arg3[%c0_4, %c0_5] : memref<8x256xf32, #tpu.memory_space<vmem>>, vector<8x256xf32>
    tpu.vector_store %arg3[%c0_4, %c0_5], %3 {strides = array<i32>} : memref<8x256xf32, #tpu.memory_space<vmem>>, vector<8x256xf32>,
    return
  }
  func.func @transform_0(%arg0: i32) -> (i32, i32) {
    %c0_i32 = arith.constant 0 : i32
    %c0_i32_0 = arith.constant 0 : i32
    return %arg0, %c0_i32 : i32, i32
  }
  func.func @transform_1(%arg0: i32) -> (i32, i32) {
    %c0_i32 = arith.constant 0 : i32
    %c0_i32_0 = arith.constant 0 : i32
    %c0_i32_1 = arith.constant 0 : i32
    return %c0_i32, %c0_i32_0 : i32, i32
  }
  func.func @transform_2(%arg0: i32) -> (i32, i32) {
    %c0_i32 = arith.constant 0 : i32
    %c0_i32_0 = arith.constant 0 : i32
    return %arg0, %c0_i32 : i32, i32
  }
}

</mosaic_0001>

<llo_original>
// kernel: tpu_custom_call.1
$region0: #{tpu_custom_call.1}
  #allocation0 [shape = 'u32[]', space=smem, size = 0x4, offset = 0x4, fixed_abs, tag = 'smem constant byte address 0x4 - core index']
  #allocation1 [shape = 'u32[144,128]{1,0:T(1,128)}', space=vmem, size = 0x12000, scoped, tag = 'internal scratch']
  %s0 = inlined_call_operand.hbm [shape: f32[8,256], index: 0, kind: input, shape index: {}]
  %s1 = inlined_call_operand.hbm [shape: f32[64,256], index: 1, kind: input, shape index: {}]
  %s2 = inlined_call_operand.hbm [shape: f32[8,256], index: 2, kind: output, shape index: {}]
  %s3 = sld [smem:[#allocation0]]
  $region26: #{tpu_custom_call.1} parent=0
    _
  %s5 = ssub.s32 1, %s3
  %s6 = scalar_select 0, %s5, %s3
  $region1: #{tpu_custom_call.1} parent=0
    #allocation2 [shape = 'u8[8192]{0}', space=vmem, size = 0x2000, scoped, tag = 'input window, operand 0, single buffered']
    #allocation3 [shape = 's32[1]{0}', space=sflag, size = 0x4, scoped, tag = 'scoped memory for tpu_custom_call.1']
    #allocation4 [shape = 's32[1]{0}', space=sflag, size = 0x4, scoped, tag = 'scoped memory for tpu_custom_call.1']
    #allocation5 [shape = 'u8[65536]{0}', space=vmem, size = 0x10000, scoped, tag = 'input window, operand 1, single buffered']
    #allocation6 [shape = 's32[1]{0}', space=sflag, size = 0x4, scoped, tag = 'scoped memory for tpu_custom_call.1']
    #allocation7 [shape = 'u8[8192]{0}', space=vmem, size = 0x2000, scoped, tag = 'output window, operand 0, single buffered']
    %7 = vsyncpa [#allocation3], 0
    %8 = vsyncpa [#allocation6], 0
    %9 = vsyncpa [#allocation4], 0
    // Predicated region
    $region2: #{tpu_custom_call.1} parent=1 // pred_check
      _
    $region3: #{tpu_custom_call.1} parent=1 // pred_check_branch
      %11 = sbr.rel (0) target = $region5
    $region4: #{tpu_custom_call.1} parent=1 // pred_region
      %s13 = ssub.s32 256, 256
      %14 = vsyncadd [#allocation3], %s13
      %s16 = sshll.u32 [#allocation2], 4
      %s17 = int_to_ptr.vmem [resolvable:$true] %s16
      %19 = dma.hbm_to_vmem [thread:$0]  %s0, 256, %s17, [#allocation3]
    $region5: #{tpu_custom_call.1} parent=1 // pred_fallthru
      _
    // Predicated region
    $region6: #{tpu_custom_call.1} parent=1 // pred_check
      _
    $region7: #{tpu_custom_call.1} parent=1 // pred_check_branch
      %21 = sbr.rel (0) target = $region9
    $region8: #{tpu_custom_call.1} parent=1 // pred_region
      %s23 = ssub.s32 2048, 2048
      %24 = vsyncadd [#allocation6], %s23
      %s25 = sshll.u32 [#allocation5], 4
      %s26 = int_to_ptr.vmem [resolvable:$true] %s25
      %31 = dma.hbm_to_vmem [thread:$0]  %s1, 2048, %s26, [#allocation6], 256, 256, 16
    $region9: #{tpu_custom_call.1} parent=1 // pred_fallthru
      _
    // Predicated region
    $region10: #{tpu_custom_call.1} parent=1 // pred_check
      _
    $region11: #{tpu_custom_call.1} parent=1 // pred_check_branch
      %33 = sbr.rel (0) target = $region13
    $region12: #{tpu_custom_call.1} parent=1 // pred_region
      %34 = dma.done [#allocation3], 256
    $region13: #{tpu_custom_call.1} parent=1 // pred_fallthru
      _
    // Predicated region
    $region14: #{tpu_custom_call.1} parent=1 // pred_check
      _
    $region15: #{tpu_custom_call.1} parent=1 // pred_check_branch
      %36 = sbr.rel (0) target = $region17
    $region16: #{tpu_custom_call.1} parent=1 // pred_region
      %37 = dma.done [#allocation6], 2048
    $region17: #{tpu_custom_call.1} parent=1 // pred_fallthru
      _
    %v38 = vld [vmem:[#allocation2] sm:$0xff]
    %v39 = vld [vmem:[#allocation2 + $0x8] sm:$0xff]
    %v40 = vld [vmem:[#allocation5] sm:$0xff]
    %v41 = vld [vmem:[#allocation5 + $0x8] sm:$0xff]
    %v42 = vld [vmem:[#allocation5 + $0x10] sm:$0xff]
    %v43 = vld [vmem:[#allocation5 + $0x18] sm:$0xff]
    %v44 = vld [vmem:[#allocation5 + $0x20] sm:$0xff]
    %v45 = vld [vmem:[#allocation5 + $0x28] sm:$0xff]
    %v46 = vld [vmem:[#allocation5 + $0x30] sm:$0xff]
    %v47 = vld [vmem:[#allocation5 + $0x38] sm:$0xff]
    %v48 = vld [vmem:[#allocation5 + $0x40] sm:$0xff]
    %v49 = vld [vmem:[#allocation5 + $0x48] sm:$0xff]
    %v50 = vld [vmem:[#allocation5 + $0x50] sm:$0xff]
    %v51 = vld [vmem:[#allocation5 + $0x58] sm:$0xff]
    %v52 = vld [vmem:[#allocation5 + $0x60] sm:$0xff]
    %v53 = vld [vmem:[#allocation5 + $0x68] sm:$0xff]
    %v54 = vld [vmem:[#allocation5 + $0x70] sm:$0xff]
    %v55 = vld [vmem:[#allocation5 + $0x78] sm:$0xff]
    %56 = vmatprep.subr.mxu0 0.0
    %57 = vmatpush1.xpose.msra.mxu0 0.0
    %58 = vmatprep.subr.mxu0 0.0
    %59 = vmatpush1.xpose.msra.mxu0 0.0
    %60 = vmatprep.subr.mxu0 0.0
    %61 = vmatpush1.xpose.msra.mxu0 0.0
    %62 = vmatprep.subr.mxu0 0.0
    %63 = vmatpush1.xpose.msra.mxu0 0.0
    %64 = vmatprep.subr.mxu0 0.0
    %65 = vmatpush1.xpose.msra.mxu0 0.0
    %66 = vmatprep.subr.mxu0 0.0
    %67 = vmatpush1.xpose.msra.mxu0 0.0
    %68 = vmatprep.subr.mxu0 0.0
    %69 = vmatpush1.xpose.msra.mxu0 0.0
    %70 = vmatprep.subr.mxu0 0.0
    %71 = vmatpush1.xpose.msra.mxu0 0.0
    %72 = vmatprep.subr.mxu0 %v55
    %73 = vmatpush1.xpose.msra.mxu0 %v54
    %74 = vmatprep.subr.mxu0 %v53
    %75 = vmatpush1.xpose.msra.mxu0 %v52
    %76 = vmatprep.subr.mxu0 %v51
    %77 = vmatpush1.xpose.msra.mxu0 %v50
    %78 = vmatprep.subr.mxu0 %v49
    %79 = vmatpush1.xpose.msra.mxu0 %v48
    %80 = vmatprep.subr.mxu0 %v47
    %81 = vmatpush1.xpose.msra.mxu0 %v46
    %82 = vmatprep.subr.mxu0 %v45
    %83 = vmatpush1.xpose.msra.mxu0 %v44
    %84 = vmatprep.subr.mxu0 %v43
    %85 = vmatpush1.xpose.msra.mxu0 %v42
    %86 = vmatprep.subr.mxu0 %v41
    %87 = vmatpush1.xpose.msra.mxu0 %v40
    %88 = vmatprep.subr.mxu0 0.0
    %89 = vmatpush2.xpose.msra.mxu0 0.0
    %90 = vmatprep.subr.mxu0 0.0
    %91 = vmatpush2.xpose.msra.mxu0 0.0
    %92 = vmatprep.subr.mxu0 0.0
    %93 = vmatpush2.xpose.msra.mxu0 0.0
    %94 = vmatprep.subr.mxu0 0.0
    %95 = vmatpush2.xpose.msra.mxu0 0.0
    %96 = vmatprep.subr.mxu0 0.0
    %97 = vmatpush2.xpose.msra.mxu0 0.0
    %98 = vmatprep.subr.mxu0 0.0
    %99 = vmatpush2.xpose.msra.mxu0 0.0
    %100 = vmatprep.subr.mxu0 0.0
    %101 = vmatpush2.xpose.msra.mxu0 0.0
    %102 = vmatprep.subr.mxu0 0.0
    %103 = vmatpush2.xpose.msra.mxu0 0.0
    %104 = vmatprep.subr.mxu0 0.0
    %105 = vmatpush2.xpose.msra.mxu0 0.0
    %106 = vmatprep.subr.mxu0 0.0
    %107 = vmatpush2.xpose.msra.mxu0 0.0
    %108 = vmatprep.subr.mxu0 0.0
    %109 = vmatpush2.xpose.msra.mxu0 0.0
    %110 = vmatprep.subr.mxu0 0.0
    %111 = vmatpush2.xpose.msra.mxu0 0.0
    %112 = vmatprep.subr.mxu0 0.0
    %113 = vmatpush2.xpose.msra.mxu0 0.0
    %114 = vmatprep.subr.mxu0 0.0
    %115 = vmatpush2.xpose.msra.mxu0 0.0
    %116 = vmatprep.subr.mxu0 0.0
    %117 = vmatpush2.xpose.msra.mxu0 0.0
    %118 = vmatprep.subr.mxu0 0.0
    %119 = vmatpush2.xpose.msra.mxu0 0.0
    %120 = vmatprep.mubr.f32.mxu0 %v39
    %121 = vmatmul.mubr.f32.gmra.mxu0 %v38
    %v122 = vpop.f32.mrf.mxu0
    %v123 = vadd.f32 0.0, %v122
    %v124 = vpop.f32.mrf.mxu0
    %125 = vdwg.mxu0
    %vm126 = vcmask 523264
    %v128 = vsel %vm126, %v123, 0
    %130 = vmatprep.subr.mxu0 0.0
    %131 = vmatpush1.msra.mxu0 0.0
    %132 = vmatprep.subr.mxu0 0.0
    %133 = vmatpush1.msra.mxu0 0.0
    %134 = vmatprep.subr.mxu0 0.0
    %135 = vmatpush1.msra.mxu0 0.0
    %136 = vmatprep.subr.mxu0 0.0
    %137 = vmatpush1.msra.mxu0 0.0
    %138 = vmatprep.subr.mxu0 0.0
    %139 = vmatpush1.msra.mxu0 0.0
    %140 = vmatprep.subr.mxu0 0.0
    %141 = vmatpush1.msra.mxu0 0.0
    %142 = vmatprep.subr.mxu0 0.0
    %143 = vmatpush1.msra.mxu0 0.0
    %144 = vmatprep.subr.mxu0 0.0
    %145 = vmatpush1.msra.mxu0 0.0
    %146 = vmatprep.subr.mxu0 %v55
    %147 = vmatpush1.msra.mxu0 %v54
    %148 = vmatprep.subr.mxu0 %v53
    %149 = vmatpush1.msra.mxu0 %v52
    %150 = vmatprep.subr.mxu0 %v51
    %151 = vmatpush1.msra.mxu0 %v50
    %152 = vmatprep.subr.mxu0 %v49
    %153 = vmatpush1.msra.mxu0 %v48
    %154 = vmatprep.subr.mxu0 %v47
    %155 = vmatpush1.msra.mxu0 %v46
    %156 = vmatprep.subr.mxu0 %v45
    %157 = vmatpush1.msra.mxu0 %v44
    %158 = vmatprep.subr.mxu0 %v43
    %159 = vmatpush1.msra.mxu0 %v42
    %160 = vmatprep.subr.mxu0 %v41
    %161 = vmatpush1.msra.mxu0 %v40
    %162 = vmatprep.subr.mxu0 0.0
    %163 = vmatpush2.msra.mxu0 0.0
    %164 = vmatprep.subr.mxu0 0.0
    %165 = vmatpush2.msra.mxu0 0.0
    %166 = vmatprep.subr.mxu0 0.0
    %167 = vmatpush2.msra.mxu0 0.0
    %168 = vmatprep.subr.mxu0 0.0
    %169 = vmatpush2.msra.mxu0 0.0
    %170 = vmatprep.subr.mxu0 0.0
    %171 = vmatpush2.msra.mxu0 0.0
    %172 = vmatprep.subr.mxu0 0.0
    %173 = vmatpush2.msra.mxu0 0.0
    %174 = vmatprep.subr.mxu0 0.0
    %175 = vmatpush2.msra.mxu0 0.0
    %176 = vmatprep.subr.mxu0 0.0
    %177 = vmatpush2.msra.mxu0 0.0
    %178 = vmatprep.subr.mxu0 0.0
    %179 = vmatpush2.msra.mxu0 0.0
    %180 = vmatprep.subr.mxu0 0.0
    %181 = vmatpush2.msra.mxu0 0.0
    %182 = vmatprep.subr.mxu0 0.0
    %183 = vmatpush2.msra.mxu0 0.0
    %184 = vmatprep.subr.mxu0 0.0
    %185 = vmatpush2.msra.mxu0 0.0
    %186 = vmatprep.subr.mxu0 0.0
    %187 = vmatpush2.msra.mxu0 0.0
    %188 = vmatprep.subr.mxu0 0.0
    %189 = vmatpush2.msra.mxu0 0.0
    %190 = vmatprep.subr.mxu0 0.0
    %191 = vmatpush2.msra.mxu0 0.0
    %192 = vmatprep.subr.mxu0 0.0
    %193 = vmatpush2.msra.mxu0 0.0
    %194 = vmatprep.mubr.f32.mxu0 0.0
    %195 = vmatmul.mubr.f32.gmra.mxu0 %v128
    %v196 = vpop.f32.mrf.mxu0
    %v197 = vadd.f32 0.0, %v196
    %v198 = vpop.f32.mrf.mxu0
    %v199 = vadd.f32 0.0, %v198
    %200 = vdwg.mxu0
    %201 = vst [vmem:[#allocation7] sm:$0xff] %v197
    %202 = vst [vmem:[#allocation7 + $0x8] sm:$0xff] %v199
    // Predicated region
    $region18: #{tpu_custom_call.1} parent=1 // pred_check
      _
    $region19: #{tpu_custom_call.1} parent=1 // pred_check_branch
      %204 = sbr.rel (0) target = $region21
    $region20: #{tpu_custom_call.1} parent=1 // pred_region
      %s206 = ssub.s32 256, 256
      %207 = vsyncadd [#allocation4], %s206
      %s209 = sshll.u32 [#allocation7], 4
      %s210 = int_to_ptr.vmem [resolvable:$true] %s209
      %212 = dma.vmem_to_hbm [thread:$0]  %s210, 256, %s2, [#allocation4]
    $region21: #{tpu_custom_call.1} parent=1 // pred_fallthru
      _
    // Predicated region
    $region22: #{tpu_custom_call.1} parent=1 // pred_check
      _
    $region23: #{tpu_custom_call.1} parent=1 // pred_check_branch
      %214 = sbr.rel (0) target = $region25
    $region24: #{tpu_custom_call.1} parent=1 // pred_region
      %215 = dma.done [#allocation4], 256
    $region25: #{tpu_custom_call.1} parent=1 // pred_fallthru
      _
    %216 = vsyncpa [#allocation3], 1
    %217 = vsyncpa [#allocation6], 1
    %218 = vsyncpa [#allocation4], 1

</llo_original>
